<compile_context>
chip_gen: v5e
topology: v5e:2x2
jax: 0.10.0
libtpu: 0.0.40
codegen_flags: <defaults>
</compile_context>

<pallas_src>
import math
from functools import partial

import jax
import jax.numpy as jnp
from jax.experimental import pallas as pl
from jax.experimental.pallas import tpu as pltpu

LANE = 128


# ----------------------------- small helpers --------------------------------
def _round_up(n, m):
    return ((n + m - 1) // m) * m


def _pow2_tile(n, cap):
    """Largest 128 * 2^a tile <= min(cap, n)."""
    limit = max(LANE, min(cap, n))
    t = LANE
    while t * 2 <= limit:
        t *= 2
    return t


def _pad2(a, rows, cols):
    return jnp.pad(a, ((0, rows - a.shape[0]), (0, cols - a.shape[1])))


def _vmem_limit_bytes(buffers):
    """buffers: iterable of (shape, dtype, n_copies). Actual working set + headroom."""
    total = 0
    for shape, dtype, n in buffers:
        total += math.prod(shape) * jnp.dtype(dtype).itemsize * n
    total = int(total * 1.25) + (4 << 20)          # Mosaic internal scratch headroom
    # TODO(synk): on v5e/v6e (128 MiB physical VMEM) this cap could be ~96 MiB.
    return min(max(total, 16 << 20), 48 << 20)     # 48 MiB cap is v7x-safe


# ------------------------------- kernels -------------------------------------
def _gcn1_kernel(a_ref, xw_ref, b1_ref, h_ref):
    """h = A_hat @ (x @ W1) + b1 : K-reduction on grid axis 1, f32 accumulation in out ref."""
    k = pl.program_id(1)

    @pl.when(k == 0)
    def _init():
        h_ref[...] = jnp.zeros_like(h_ref) + b1_ref[...]

    h_ref[...] += jnp.dot(a_ref[...], xw_ref[...], preferred_element_type=jnp.float32)


def _pooled_head_kernel(a_ref, xw2_ref, pr_ref, b2c_ref, wl_ref, bl_ref,
                        o_ref, row_acc, pool_acc):
    """out = (P_r @ (A_hat @ xw2_s) + n_sel*b2) @ W_lin + b_lin.

    Reads A_hat tiles directly (single extra pass over the one dense array); the
    per-graph reduction P_r and the pooled-normalization r are tiny O(N)/O(G) operands.
    """
    i = pl.program_id(0)
    k = pl.program_id(1)
    last_i = pl.num_programs(0) - 1
    last_k = pl.num_programs(1) - 1

    @pl.when((i == 0) & (k == 0))
    def _init_pool():
        pool_acc[...] = jnp.zeros_like(pool_acc)

    @pl.when(k == 0)
    def _init_row():
        row_acc[...] = jnp.zeros_like(row_acc)

    row_acc[...] += jnp.dot(a_ref[...], xw2_ref[...], preferred_element_type=jnp.float32)

    @pl.when(k == last_k)
    def _fold_rows():
        pool_acc[...] += jnp.dot(pr_ref[...], row_acc[...],
                                 preferred_element_type=jnp.float32)

    @pl.when((i == last_i) & (k == last_k))
    def _finalize():
        y = pool_acc[...] + b2c_ref[...]
        o_ref[...] = jnp.dot(y, wl_ref[...], preferred_element_type=jnp.float32) + bl_ref[...]


# ------------------------------ glue + wrapper --------------------------------
def _topk_mask(score, batch, num_graphs, ratio):
    """Top ceil(ratio*n_g) nodes per graph (PyG TopKPooling), O(N log N) sort-based."""
    n = score.shape[0]
    counts = jnp.zeros((num_graphs,), jnp.int32).at[batch].add(1)
    k_per_graph = jnp.ceil(ratio * counts.astype(jnp.float32)).astype(jnp.int32)
    # Sort by (graph asc, score desc); stable sort breaks exact ties by node index
    # (torch.topk's order on exact ties is unspecified; any consistent choice is valid).
    order = jnp.lexsort((-score, batch))
    starts = jnp.cumsum(counts) - counts
    sorted_batch = batch[order]
    rank_in_graph = jnp.arange(n, dtype=jnp.int32) - starts[sorted_batch]
    keep_sorted = rank_in_graph < k_per_graph[sorted_batch]
    return jnp.zeros((n,), dtype=bool).at[order].set(keep_sorted)


@partial(jax.jit, static_argnames=("num_graphs", "ratio", "agg_dtype"))
def topk_pool_reg_forward(x, edge_index, batch, params, num_graphs,
                          ratio=0.5, agg_dtype=jnp.bfloat16):
    """x: [N, C_in] f32; edge_index: [2, E] i32 (row 0 = src, row 1 = dst); batch: [N] i32."""
    w1, b1, w_score, w2, b2, w_lin, b_lin = params
    N, _ = x.shape
    H = w1.shape[1]

    # --- tiles first, then pad N up to the tile multiple (large tiles for any N) ---
    H_pad = _round_up(H, LANE)
    G_pad = _round_up(max(num_graphs, 8), 8)
    n_base = _round_up(max(N, LANE), LANE)
    # >= 2 row tiles whenever possible so the "parallel" axis splits across v7x's 2 TCs.
    tm = _pow2_tile(n_base, min(512, max(LANE, n_base // 2)))
    tk = _pow2_tile(n_base, 2048)
    N_pad = _round_up(n_base, max(tm, tk))

    # --- O(E)/O(N) glue: degrees + ONE scatter building normalized A_hat in agg_dtype
    #     (self loops and D^-1/2 row/col scalings folded into the scatter values). ---
    src, dst = edge_index[0], edge_index[1]
    nodes = jnp.arange(N, dtype=edge_index.dtype)
    deg = jnp.ones((N,), jnp.float32).at[dst].add(1.0)        # in-degree + self loop (>= 1)
    dinv = jax.lax.rsqrt(deg)
    src_all = jnp.concatenate([src, nodes])
    dst_all = jnp.concatenate([dst, nodes])
    vals = (dinv[dst_all] * dinv[src_all]).astype(agg_dtype)
    a_hat_pad = jnp.zeros((N_pad, N_pad), agg_dtype).at[dst_all, src_all].add(vals)

    # --- Kernel 1: h1 = A_hat @ (x @ W1) + b1 (project-then-aggregate) ---
    xw_pad = _pad2(x @ w1, N_pad, H_pad).astype(agg_dtype)
    b1_pad = _pad2(b1.reshape(1, -1), 1, H_pad)
    vmem1 = _vmem_limit_bytes([
        ((tm, tk), agg_dtype, 2), ((tk, H_pad), agg_dtype, 2),
        ((1, H_pad), jnp.float32, 2), ((tm, H_pad), jnp.float32, 2),
    ])
    h1_pad = pl.pallas_call(
        _gcn1_kernel,
        out_shape=jax.ShapeDtypeStruct((N_pad, H_pad), jnp.float32),
        grid_spec=pltpu.PrefetchScalarGridSpec(
            num_scalar_prefetch=0,
            grid=(N_pad // tm, N_pad // tk),
            in_specs=[
                pl.BlockSpec((tm, tk), lambda i, k: (i, k)),        # A_hat tile
                pl.BlockSpec((tk, H_pad), lambda i, k: (k, 0)),     # (x @ W1) tile
                pl.BlockSpec((1, H_pad), lambda i, k: (0, 0)),      # b1
            ],
            out_specs=pl.BlockSpec((tm, H_pad), lambda i, k: (i, 0)),
        ),
        compiler_params=pltpu.CompilerParams(
            dimension_semantics=("parallel", "arbitrary"),
            vmem_limit_bytes=vmem1),
    )(a_hat_pad, xw_pad, b1_pad)
    # NOTE: `x_l1.relu()` in the PyTorch forward is out-of-place and unassigned -> no-op.
    # Padded rows of h1_pad equal b1; they are neutralized by the zero mask below.

    # --- TopKPooling (ratio, tanh score) as a node mask over the original index space ---
    w_score_pad = jnp.pad(w_score, (0, H_pad - H))
    score_pad = jnp.tanh((h1_pad @ w_score_pad) * jax.lax.rsqrt(jnp.sum(w_score * w_score)))
    mask_n = _topk_mask(score_pad[:N], batch, num_graphs, ratio).astype(jnp.float32)
    mask_pad = jnp.pad(mask_n, (0, N_pad - N))
    x_pool_pad = h1_pad * (score_pad * mask_pad)[:, None]       # x[perm] * score[perm]

    # Pooled normalization, all O(E)/O(N): deg_p = mask*(sum_in mask + 1);
    # a_hat_pool == r (.) a_hat (.) r with r = mask * dinv_p * sqrt(deg)  (never materialized).
    inmask = jnp.zeros((N,), jnp.float32).at[dst].add(mask_n[src])
    deg_p = mask_n * (inmask + mask_n)
    dinv_p = jnp.where(deg_p > 0, jax.lax.rsqrt(deg_p), 0.0)
    r_n = mask_n * dinv_p * jnp.sqrt(deg)
    r_pad = jnp.pad(r_n, (0, N_pad - N))

    # --- Kernel 2 operands: layer-2 GCN + global_add_pool + Linear, fully fused ---
    w2_pad = _pad2(w2, H_pad, H_pad)
    xw2_pad = ((x_pool_pad @ w2_pad) * r_pad[:, None]).astype(agg_dtype)   # r * (x_pool @ W2)
    pr_pad = jnp.zeros((G_pad, N_pad), jnp.float32).at[batch, jnp.arange(N)].set(r_n)
    n_sel = jnp.zeros((num_graphs,), jnp.float32).at[batch].add(mask_n)    # kept nodes / graph
    b2c_pad = _pad2(n_sel[:, None] * b2[None, :], G_pad, H_pad)            # pooled layer-2 bias
    wl_pad = _pad2(w_lin, H_pad, LANE)
    bl_pad = _pad2(b_lin.reshape(1, -1), 1, LANE)

    vmem2 = _vmem_limit_bytes([
        ((tm, tk), agg_dtype, 2), ((tk, H_pad), agg_dtype, 2),
        ((G_pad, tm), jnp.float32, 2), ((G_pad, H_pad), jnp.float32, 2),
        ((H_pad, LANE), jnp.float32, 2), ((1, LANE), jnp.float32, 2),
        ((G_pad, LANE), jnp.float32, 2),
        ((tm, H_pad), jnp.float32, 1), ((G_pad, H_pad), jnp.float32, 1),
    ])
    out_pad = pl.pallas_call(
        _pooled_head_kernel,
        out_shape=jax.ShapeDtypeStruct((G_pad, LANE), jnp.float32),
        grid_spec=pltpu.PrefetchScalarGridSpec(
            num_scalar_prefetch=0,
            grid=(N_pad // tm, N_pad // tk),
            in_specs=[
                pl.BlockSpec((tm, tk), lambda i, k: (i, k)),        # A_hat tile (same array)
                pl.BlockSpec((tk, H_pad), lambda i, k: (k, 0)),     # r * (x_pool @ W2) tile
                pl.BlockSpec((G_pad, tm), lambda i, k: (0, i)),     # P_r tile (f32, full sublanes)
                pl.BlockSpec((G_pad, H_pad), lambda i, k: (0, 0)),  # n_sel * b2
                pl.BlockSpec((H_pad, LANE), lambda i, k: (0, 0)),   # W_lin (lane padded)
                pl.BlockSpec((1, LANE), lambda i, k: (0, 0)),       # b_lin
            ],
            out_specs=pl.BlockSpec((G_pad, LANE), lambda i, k: (0, 0)),
            scratch_shapes=[pltpu.VMEM((tm, H_pad), jnp.float32),
                            pltpu.VMEM((G_pad, H_pad), jnp.float32)],
        ),
        compiler_params=pltpu.CompilerParams(
            dimension_semantics=("arbitrary", "arbitrary"),
            vmem_limit_bytes=vmem2),
    )(a_hat_pad, xw2_pad, pr_pad, b2c_pad, wl_pad, bl_pad)

    return out_pad[:num_graphs, :1]


# ------------------------------ reference + test ------------------------------
def _reference_forward(x, edge_index, batch, params, num_graphs, ratio=0.5,
                       agg_dtype=jnp.float32):
    """Plain-JAX dense reference; agg_dtype emulates the kernel's MXU operand precision."""
    w1, b1, w_score, w2, b2, w_lin, b_lin = params
    N = x.shape[0]
    src, dst = edge_index[0], edge_index[1]
    A = jnp.zeros((N, N), jnp.float32).at[dst, src].add(1.0)
    A1 = A + jnp.eye(N, dtype=jnp.float32)
    deg = A1.sum(axis=1)
    dinv = jnp.where(deg > 0, jax.lax.rsqrt(deg), 0.0)
    a_hat = dinv[:, None] * A1 * dinv[None, :]
    h1 = jnp.dot(a_hat.astype(agg_dtype), (x @ w1).astype(agg_dtype),
                 preferred_element_type=jnp.float32) + b1     # `.relu()` in torch is a no-op
    score = jnp.tanh((h1 @ w_score) / jnp.sqrt(jnp.sum(w_score * w_score)))
    mask = _topk_mask(score, batch, num_graphs, ratio).astype(jnp.float32)
    x_pool = h1 * (score * mask)[:, None]
    A_pool = A * mask[:, None] * mask[None, :] + jnp.diag(mask)
    deg_p = A_pool.sum(axis=1)
    dinv_p = jnp.where(deg_p > 0, jax.lax.rsqrt(deg_p), 0.0)
    a_hat_pool = dinv_p[:, None] * A_pool * dinv_p[None, :]
    z = jnp.dot(a_hat_pool.astype(agg_dtype), (x_pool @ w2).astype(agg_dtype),
                preferred_element_type=jnp.float32) + mask[:, None] * b2
    pooled = jax.ops.segment_sum(z, batch, num_segments=num_graphs)
    return pooled @ w_lin + b_lin


def _glorot(key, shape):
    fan_in, fan_out = shape
    limit = (6.0 / (fan_in + fan_out)) ** 0.5
    return jax.random.uniform(key, shape, jnp.float32, -limit, limit)


if __name__ == "__main__":
    num_graphs = 2
    nodes_per_graph = 8            # TopKPooling(ratio=0.5) keeps ceil(0.5*8)=4 nodes / graph
    N = num_graphs * nodes_per_graph
    C_in, H = 8, 32

    key = jax.random.PRNGKey(0)
    kx, k1, ks, k2, kl = jax.random.split(key, 5)

    x = jax.random.normal(kx, (N, C_in), jnp.float32)

    # bidirectional ring edges inside each graph
    srcs, dsts = [], []
    for g in range(num_graphs):
        off = g * nodes_per_graph
        for i in range(nodes_per_graph):
            j = (i + 1) % nodes_per_graph
            srcs += [off + i, off + j]
            dsts += [off + j, off + i]
    edge_index = jnp.array([srcs, dsts], dtype=jnp.int32)    # [2, E]
    batch = jnp.repeat(jnp.arange(num_graphs, dtype=jnp.int32), nodes_per_graph)

    params = (
        _glorot(k1, (C_in, H)),                                      # GCNConv1 weight
        jnp.zeros((H,), jnp.float32),                                # GCNConv1 bias
        jax.random.uniform(ks, (H,), jnp.float32,
                           -1.0 / H ** 0.5, 1.0 / H ** 0.5),         # TopKPooling score weight
        _glorot(k2, (H, H)),                                         # GCNConv2 weight
        jnp.zeros((H,), jnp.float32),                                # GCNConv2 bias
        _glorot(kl, (H, 1)),                                         # Linear weight (stored [H,1])
        jnp.zeros((1,), jnp.float32),                                # Linear bias
    )

    # f32 aggregation: tight correctness check against the pure-JAX dense reference.
    out_f32 = topk_pool_reg_forward(x, edge_index, batch, params,
                                    num_graphs=num_graphs, agg_dtype=jnp.float32)
    out_f32 = jax.block_until_ready(out_f32)
    ref_f32 = _reference_forward(x, edge_index, batch, params, num_graphs)
    assert out_f32.shape == (num_graphs, 1)
    assert jnp.allclose(out_f32, ref_f32, atol=1e-3, rtol=1e-3), (out_f32, ref_f32)

    # bf16 aggregation (production config for v6e/v7x MXU, f32 accumulation): compare against
    # the dtype-parameterized reference (same operand quantization -> same top-k mask).
    out_bf16 = topk_pool_reg_forward(x, edge_index, batch, params,
                                     num_graphs=num_graphs, agg_dtype=jnp.bfloat16)
    out_bf16 = jax.block_until_ready(out_bf16)
    ref_bf16 = _reference_forward(x, edge_index, batch, params, num_graphs,
                                  agg_dtype=jnp.bfloat16)
    assert out_bf16.shape == (num_graphs, 1)
    assert bool(jnp.all(jnp.isfinite(out_bf16)))
    assert jnp.allclose(out_bf16, ref_bf16, atol=5e-2, rtol=5e-2), (out_bf16, ref_bf16)

    print("KERNEL_OK")
</pallas_src>

<mosaic_0001>
module attributes {stable_mosaic.version = 11 : i64} {
  func.func @_gcn1_kernel(%arg0: i32, %arg1: i32, %arg2: memref<128x128xf32, #tpu.memory_space<vmem>>, %arg3: memref<128x128xf32, #tpu.memory_space<vmem>>, %arg4: memref<1x128xf32, #tpu.memory_space<vmem>>, %arg5: memref<128x128xf32, #tpu.memory_space<vmem>>) attributes {dimension_semantics = [#tpu.dimension_semantics<parallel>, #tpu.dimension_semantics<arbitrary>], iteration_bounds = array<i64: 1, 1>, scalar_prefetch = 0 : i64, scratch_operands = 0 : i64, tpu.core_type = #tpu.core_type<tc>, window_params = [{transform_indices = @transform_0, window_bounds = array<i64: 128, 128>}, {transform_indices = @transform_1, window_bounds = array<i64: 128, 128>}, {pipeline_mode = #tpu.pipeline_mode<synchronous>, transform_indices = @transform_2, window_bounds = array<i64: 1, 128>}, {transform_indices = @transform_3, window_bounds = array<i64: 128, 128>}]} {
    %c0_i32 = arith.constant 0 : i32
    %0 = arith.cmpi eq, %arg1, %c0_i32 : i32
    %1 = arith.extui %0 : i1 to i32
    %c0_i32_0 = arith.constant 0 : i32
    %2 = arith.cmpi ne, %1, %c0_i32_0 : i32
    scf.if %2 {
      %cst_8 = arith.constant 0.000000e+00 : f32
      %9 = vector.broadcast %cst_8 : f32 to vector<128x128xf32>
      %c0_9 = arith.constant 0 : index
      %c0_10 = arith.constant 0 : index
      %10 = vector.load %arg4[%c0_9, %c0_10] : memref<1x128xf32, #tpu.memory_space<vmem>>, vector<1x128xf32>
      %11 = vector.broadcast %10 : vector<1x128xf32> to vector<128x128xf32>
      %12 = arith.addf %9, %11 : vector<128x128xf32>
      %c0_11 = arith.constant 0 : index
      %c0_12 = arith.constant 0 : index
      %13 = vector.load %arg5[%c0_11, %c0_12] : memref<128x128xf32, #tpu.memory_space<vmem>>, vector<128x128xf32>
      tpu.vector_store %arg5[%c0_11, %c0_12], %12 {strides = array<i32>} : memref<128x128xf32, #tpu.memory_space<vmem>>, vector<128x128xf32>,
    } else {
    }
    %c0 = arith.constant 0 : index
    %c0_1 = arith.constant 0 : index
    %3 = vector.load %arg5[%c0, %c0_1] : memref<128x128xf32, #tpu.memory_space<vmem>>, vector<128x128xf32>
    %c0_2 = arith.constant 0 : index
    %c0_3 = arith.constant 0 : index
    %4 = vector.load %arg2[%c0_2, %c0_3] : memref<128x128xf32, #tpu.memory_space<vmem>>, vector<128x128xf32>
    %c0_4 = arith.constant 0 : index
    %c0_5 = arith.constant 0 : index
    %5 = vector.load %arg3[%c0_4, %c0_5] : memref<128x128xf32, #tpu.memory_space<vmem>>, vector<128x128xf32>
    %cst = arith.constant dense<0.000000e+00> : vector<128x128xf32>
    %6 = tpu.matmul %4, %5, %cst {dimension_numbers = #tpu.dot_dimension_numbers<[1], [0], [0], [1], [0, 0, 1, 1], [], []>} : vector<128x128xf32>, vector<128x128xf32>, vector<128x128xf32> -> vector<128x128xf32>
    %7 = arith.addf %3, %6 : vector<128x128xf32>
    %c0_6 = arith.constant 0 : index
    %c0_7 = arith.constant 0 : index
    %8 = vector.load %arg5[%c0_6, %c0_7] : memref<128x128xf32, #tpu.memory_space<vmem>>, vector<128x128xf32>
    tpu.vector_store %arg5[%c0_6, %c0_7], %7 {strides = array<i32>} : memref<128x128xf32, #tpu.memory_space<vmem>>, vector<128x128xf32>,
    return
  }
  func.func @transform_0(%arg0: i32, %arg1: i32) -> (i32, i32) {
    %c0_i32 = arith.constant 0 : i32
    return %arg0, %arg1 : i32, i32
  }
  func.func @transform_1(%arg0: i32, %arg1: i32) -> (i32, i32) {
    %c0_i32 = arith.constant 0 : i32
    %c0_i32_0 = arith.constant 0 : i32
    return %arg1, %c0_i32 : i32, i32
  }
  func.func @transform_2(%arg0: i32, %arg1: i32) -> (i32, i32) {
    %c0_i32 = arith.constant 0 : i32
    %c0_i32_0 = arith.constant 0 : i32
    %c0_i32_1 = arith.constant 0 : i32
    return %c0_i32, %c0_i32_0 : i32, i32
  }
  func.func @transform_3(%arg0: i32, %arg1: i32) -> (i32, i32) {
    %c0_i32 = arith.constant 0 : i32
    %c0_i32_0 = arith.constant 0 : i32
    return %arg0, %c0_i32 : i32, i32
  }
}

module attributes {stable_mosaic.version = 11 : i64} {
  func.func @_pooled_head_kernel(%arg0: i32, %arg1: i32, %arg2: memref<128x128xf32, #tpu.memory_space<vmem>>, %arg3: memref<128x128xf32, #tpu.memory_space<vmem>>, %arg4: memref<8x128xf32, #tpu.memory_space<vmem>>, %arg5: memref<8x128xf32, #tpu.memory_space<vmem>>, %arg6: memref<128x128xf32, #tpu.memory_space<vmem>>, %arg7: memref<1x128xf32, #tpu.memory_space<vmem>>, %arg8: memref<8x128xf32, #tpu.memory_space<vmem>>, %arg9: memref<128x128xf32, #tpu.memory_space<vmem>>, %arg10: memref<8x128xf32, #tpu.memory_space<vmem>>) attributes {dimension_semantics = [#tpu.dimension_semantics<arbitrary>, #tpu.dimension_semantics<arbitrary>], iteration_bounds = array<i64: 1, 1>, scalar_prefetch = 0 : i64, scratch_operands = 2 : i64, tpu.core_type = #tpu.core_type<tc>, window_params = [{transform_indices = @transform_0, window_bounds = array<i64: 128, 128>}, {transform_indices = @transform_1, window_bounds = array<i64: 128, 128>}, {transform_indices = @transform_2, window_bounds = array<i64: 8, 128>}, {pipeline_mode = #tpu.pipeline_mode<synchronous>, transform_indices = @transform_3, window_bounds = array<i64: 8, 128>}, {pipeline_mode = #tpu.pipeline_mode<synchronous>, transform_indices = @transform_4, window_bounds = array<i64: 128, 128>}, {pipeline_mode = #tpu.pipeline_mode<synchronous>, transform_indices = @transform_5, window_bounds = array<i64: 1, 128>}, {pipeline_mode = #tpu.pipeline_mode<synchronous>, transform_indices = @transform_6, window_bounds = array<i64: 8, 128>}]} {
    %c0_i32 = arith.constant 0 : i32
    %0 = arith.cmpi eq, %arg0, %c0_i32 : i32
    %c0_i32_0 = arith.constant 0 : i32
    %1 = arith.cmpi eq, %arg1, %c0_i32_0 : i32
    %2 = arith.andi %0, %1 : i1
    %3 = arith.extui %2 : i1 to i32
    %c0_i32_1 = arith.constant 0 : i32
    %4 = arith.cmpi ne, %3, %c0_i32_1 : i32
    scf.if %4 {
      %cst_16 = arith.constant 0.000000e+00 : f32
      %22 = vector.broadcast %cst_16 : f32 to vector<8x128xf32>
      %c0_17 = arith.constant 0 : index
      %c0_18 = arith.constant 0 : index
      %23 = vector.load %arg10[%c0_17, %c0_18] : memref<8x128xf32, #tpu.memory_space<vmem>>, vector<8x128xf32>
      tpu.vector_store %arg10[%c0_17, %c0_18], %22 {strides = array<i32>} : memref<8x128xf32, #tpu.memory_space<vmem>>, vector<8x128xf32>,
    } else {
    }
    %c0_i32_2 = arith.constant 0 : i32
    %5 = arith.cmpi eq, %arg1, %c0_i32_2 : i32
    %6 = arith.extui %5 : i1 to i32
    %c0_i32_3 = arith.constant 0 : i32
    %7 = arith.cmpi ne, %6, %c0_i32_3 : i32
    scf.if %7 {
      %cst_16 = arith.constant 0.000000e+00 : f32
      %22 = vector.broadcast %cst_16 : f32 to vector<128x128xf32>
      %c0_17 = arith.constant 0 : index
      %c0_18 = arith.constant 0 : index
      %23 = vector.load %arg9[%c0_17, %c0_18] : memref<128x128xf32, #tpu.memory_space<vmem>>, vector<128x128xf32>
      tpu.vector_store %arg9[%c0_17, %c0_18], %22 {strides = array<i32>} : memref<128x128xf32, #tpu.memory_space<vmem>>, vector<128x128xf32>,
    } else {
    }
    %c0 = arith.constant 0 : index
    %c0_4 = arith.constant 0 : index
    %8 = vector.load %arg9[%c0, %c0_4] : memref<128x128xf32, #tpu.memory_space<vmem>>, vector<128x128xf32>
    %c0_5 = arith.constant 0 : index
    %c0_6 = arith.constant 0 : index
    %9 = vector.load %arg2[%c0_5, %c0_6] : memref<128x128xf32, #tpu.memory_space<vmem>>, vector<128x128xf32>
    %c0_7 = arith.constant 0 : index
    %c0_8 = arith.constant 0 : index
    %10 = vector.load %arg3[%c0_7, %c0_8] : memref<128x128xf32, #tpu.memory_space<vmem>>, vector<128x128xf32>
    %cst = arith.constant dense<0.000000e+00> : vector<128x128xf32>
    %11 = tpu.matmul %9, %10, %cst {dimension_numbers = #tpu.dot_dimension_numbers<[1], [0], [0], [1], [0, 0, 1, 1], [], []>} : vector<128x128xf32>, vector<128x128xf32>, vector<128x128xf32> -> vector<128x128xf32>
    %12 = arith.addf %8, %11 : vector<128x128xf32>
    %c0_9 = arith.constant 0 : index
    %c0_10 = arith.constant 0 : index
    %13 = vector.load %arg9[%c0_9, %c0_10] : memref<128x128xf32, #tpu.memory_space<vmem>>, vector<128x128xf32>
    tpu.vector_store %arg9[%c0_9, %c0_10], %12 {strides = array<i32>} : memref<128x128xf32, #tpu.memory_space<vmem>>, vector<128x128xf32>,
    %c0_i32_11 = arith.constant 0 : i32
    %14 = arith.cmpi eq, %arg1, %c0_i32_11 : i32
    %15 = arith.extui %14 : i1 to i32
    %c0_i32_12 = arith.constant 0 : i32
    %16 = arith.cmpi ne, %15, %c0_i32_12 : i32
    scf.if %16 {
      %c0_16 = arith.constant 0 : index
      %c0_17 = arith.constant 0 : index
      %22 = vector.load %arg10[%c0_16, %c0_17] : memref<8x128xf32, #tpu.memory_space<vmem>>, vector<8x128xf32>
      %c0_18 = arith.constant 0 : index
      %c0_19 = arith.constant 0 : index
      %23 = vector.load %arg4[%c0_18, %c0_19] : memref<8x128xf32, #tpu.memory_space<vmem>>, vector<8x128xf32>
      %c0_20 = arith.constant 0 : index
      %c0_21 = arith.constant 0 : index
      %24 = vector.load %arg9[%c0_20, %c0_21] : memref<128x128xf32, #tpu.memory_space<vmem>>, vector<128x128xf32>
      %cst_22 = arith.constant dense<0.000000e+00> : vector<8x128xf32>
      %25 = tpu.matmul %23, %24, %cst_22 {dimension_numbers = #tpu.dot_dimension_numbers<[1], [0], [0], [1], [0, 0, 1, 1], [], []>} : vector<8x128xf32>, vector<128x128xf32>, vector<8x128xf32> -> vector<8x128xf32>
      %26 = arith.addf %22, %25 : vector<8x128xf32>
      %c0_23 = arith.constant 0 : index
      %c0_24 = arith.constant 0 : index
      %27 = vector.load %arg10[%c0_23, %c0_24] : memref<8x128xf32, #tpu.memory_space<vmem>>, vector<8x128xf32>
      tpu.vector_store %arg10[%c0_23, %c0_24], %26 {strides = array<i32>} : memref<8x128xf32, #tpu.memory_space<vmem>>, vector<8x128xf32>,
    } else {
    }
    %c0_i32_13 = arith.constant 0 : i32
    %17 = arith.cmpi eq, %arg0, %c0_i32_13 : i32
    %c0_i32_14 = arith.constant 0 : i32
    %18 = arith.cmpi eq, %arg1, %c0_i32_14 : i32
    %19 = arith.andi %17, %18 : i1
    %20 = arith.extui %19 : i1 to i32
    %c0_i32_15 = arith.constant 0 : i32
    %21 = arith.cmpi ne, %20, %c0_i32_15 : i32
    scf.if %21 {
      %c0_16 = arith.constant 0 : index
      %c0_17 = arith.constant 0 : index
      %22 = vector.load %arg10[%c0_16, %c0_17] : memref<8x128xf32, #tpu.memory_space<vmem>>, vector<8x128xf32>
      %c0_18 = arith.constant 0 : index
      %c0_19 = arith.constant 0 : index
      %23 = vector.load %arg5[%c0_18, %c0_19] : memref<8x128xf32, #tpu.memory_space<vmem>>, vector<8x128xf32>
      %24 = arith.addf %22, %23 : vector<8x128xf32>
      %c0_20 = arith.constant 0 : index
      %c0_21 = arith.constant 0 : index
      %25 = vector.load %arg6[%c0_20, %c0_21] : memref<128x128xf32, #tpu.memory_space<vmem>>, vector<128x128xf32>
      %cst_22 = arith.constant dense<0.000000e+00> : vector<8x128xf32>
      %26 = tpu.matmul %24, %25, %cst_22 {dimension_numbers = #tpu.dot_dimension_numbers<[1], [0], [0], [1], [0, 0, 1, 1], [], []>} : vector<8x128xf32>, vector<128x128xf32>, vector<8x128xf32> -> vector<8x128xf32>
      %c0_23 = arith.constant 0 : index
      %c0_24 = arith.constant 0 : index
      %27 = vector.load %arg7[%c0_23, %c0_24] : memref<1x128xf32, #tpu.memory_space<vmem>>, vector<1x128xf32>
      %28 = vector.broadcast %27 : vector<1x128xf32> to vector<8x128xf32>
      %29 = arith.addf %26, %28 : vector<8x128xf32>
      %c0_25 = arith.constant 0 : index
      %c0_26 = arith.constant 0 : index
      %30 = vector.load %arg8[%c0_25, %c0_26] : memref<8x128xf32, #tpu.memory_space<vmem>>, vector<8x128xf32>
      tpu.vector_store %arg8[%c0_25, %c0_26], %29 {strides = array<i32>} : memref<8x128xf32, #tpu.memory_space<vmem>>, vector<8x128xf32>,
    } else {
    }
    return
  }
  func.func @transform_0(%arg0: i32, %arg1: i32) -> (i32, i32) {
    %c0_i32 = arith.constant 0 : i32
    return %arg0, %arg1 : i32, i32
  }
  func.func @transform_1(%arg0: i32, %arg1: i32) -> (i32, i32) {
    %c0_i32 = arith.constant 0 : i32
    %c0_i32_0 = arith.constant 0 : i32
    return %arg1, %c0_i32 : i32, i32
  }
  func.func @transform_2(%arg0: i32, %arg1: i32) -> (i32, i32) {
    %c0_i32 = arith.constant 0 : i32
    %c0_i32_0 = arith.constant 0 : i32
    return %c0_i32, %arg0 : i32, i32
  }
  func.func @transform_3(%arg0: i32, %arg1: i32) -> (i32, i32) {
    %c0_i32 = arith.constant 0 : i32
    %c0_i32_0 = arith.constant 0 : i32
    %c0_i32_1 = arith.constant 0 : i32
    return %c0_i32, %c0_i32_0 : i32, i32
  }
  func.func @transform_4(%arg0: i32, %arg1: i32) -> (i32, i32) {
    %c0_i32 = arith.constant 0 : i32
    %c0_i32_0 = arith.constant 0 : i32
    %c0_i32_1 = arith.constant 0 : i32
    return %c0_i32, %c0_i32_0 : i32, i32
  }
  func.func @transform_5(%arg0: i32, %arg1: i32) -> (i32, i32) {
    %c0_i32 = arith.constant 0 : i32
    %c0_i32_0 = arith.constant 0 : i32
    %c0_i32_1 = arith.constant 0 : i32
    return %c0_i32, %c0_i32_0 : i32, i32
  }
  func.func @transform_6(%arg0: i32, %arg1: i32) -> (i32, i32) {
    %c0_i32 = arith.constant 0 : i32
    %c0_i32_0 = arith.constant 0 : i32
    %c0_i32_1 = arith.constant 0 : i32
    return %c0_i32, %c0_i32_0 : i32, i32
  }
}

</mosaic_0001>

<llo_original>
// kernel: mul.24
$region0: #{mul.24}
  #allocation0 [shape = 's32[1]{0}', space=sflag, size = 0x4, scoped, tag = 'scoped memory for mul.24']
  %s0 = inlined_call_operand.vmem [shape: f32[48], index: 0, kind: input, shape index: {}]
  %s1 = inlined_call_operand.vmem [shape: f32[48], index: 1, kind: input, shape index: {}]
  %s2 = inlined_call_operand.vmem [shape: f32[48], index: 2, kind: output, shape index: {}]
  %v3 = vld [vmem:[%s0] sm:$0x1]
  %v4 = vld [vmem:[%s1] sm:$0x1]
  %5 = xla_tuple %v3, %v4
  %6 = xla_tuple %5
  %v7 = vmul.f32 %v3, %v4
  %8 = xla_tuple %v7
  %9 = vst [vmem:[%s2] sm:$0x1] %v7

// kernel: topk_pool_reg_forward.2
$region0: #{topk_pool_reg_forward.2}
  #allocation0 [shape = 'u32[]', space=smem, size = 0x4, offset = 0x4, fixed_abs, tag = 'smem constant byte address 0x4 - core index']
  #allocation1 [shape = 'u32[72,128]{1,0:T(1,128)}', space=vmem, size = 0x9000, scoped, tag = 'internal scratch']
  %s0 = inlined_call_operand.vmem [shape: f32[128,128], index: 0, kind: input, shape index: {}]
  %s1 = inlined_call_operand.vmem [shape: f32[128,128], index: 1, kind: input, shape index: {}]
  %s2 = inlined_call_operand.vmem [shape: f32[1,128], index: 2, kind: input, shape index: {}]
  %s3 = inlined_call_operand.vmem [shape: f32[128,128], index: 3, kind: output, shape index: {}]
  %s4 = sld [smem:[#allocation0]]
  $region26: #{topk_pool_reg_forward.2} parent=0
    _
  %s6 = ssub.s32 1, %s4
  %s7 = scalar_select 0, %s6, %s4
  // Predicated region
  $region2: #{topk_pool_reg_forward.2} parent=0 // pred_check
    _
  $region3: #{topk_pool_reg_forward.2} parent=0 // pred_check_branch
    %9 = sbr.rel (0) target = $region5
  $region4: #{topk_pool_reg_forward.2} parent=0 // pred_region
    _
  $region5: #{topk_pool_reg_forward.2} parent=0 // pred_fallthru
    _
  // Predicated region
  $region6: #{topk_pool_reg_forward.2} parent=0 // pred_check
    _
  $region7: #{topk_pool_reg_forward.2} parent=0 // pred_check_branch
    %11 = sbr.rel (0) target = $region9
  $region8: #{topk_pool_reg_forward.2} parent=0 // pred_region
    _
  $region9: #{topk_pool_reg_forward.2} parent=0 // pred_fallthru
    _
  // Predicated region
  $region10: #{topk_pool_reg_forward.2} parent=0 // pred_check
    _
  $region11: #{topk_pool_reg_forward.2} parent=0 // pred_check_branch
    %13 = sbr.rel (0) target = $region13
  $region12: #{topk_pool_reg_forward.2} parent=0 // pred_region
    _
  $region13: #{topk_pool_reg_forward.2} parent=0 // pred_fallthru
    _
  %p14 = scmp.eq.s32.totalorder 0, 0
  // Predicated region
  $region14: #{topk_pool_reg_forward.2} parent=0 // pred_check
    %p15 = pneg %p14
  $region15: #{topk_pool_reg_forward.2} parent=0 // pred_check_branch
    %17 = sbr.rel (%p15) target = $region17
  $region16: #{topk_pool_reg_forward.2} parent=0 // pred_region
    %v18 = vld [vmem:[%s2] sm:$0x1]
    %v20 = vperm.slane %v18, 0
    %v22 = vadd.f32 %v20, 0.0
    %23 = vst [vmem:[%s3] sm:$0xff] %v22
    %24 = vst [vmem:[%s3 + $0x8] sm:$0xff] %v22
    %25 = vst [vmem:[%s3 + $0x10] sm:$0xff] %v22
    %26 = vst [vmem:[%s3 + $0x18] sm:$0xff] %v22
    %27 = vst [vmem:[%s3 + $0x20] sm:$0xff] %v22
    %28 = vst [vmem:[%s3 + $0x28] sm:$0xff] %v22
    %29 = vst [vmem:[%s3 + $0x30] sm:$0xff] %v22
    %30 = vst [vmem:[%s3 + $0x38] sm:$0xff] %v22
    %31 = vst [vmem:[%s3 + $0x40] sm:$0xff] %v22
    %32 = vst [vmem:[%s3 + $0x48] sm:$0xff] %v22
    %33 = vst [vmem:[%s3 + $0x50] sm:$0xff] %v22
    %34 = vst [vmem:[%s3 + $0x58] sm:$0xff] %v22
    %35 = vst [vmem:[%s3 + $0x60] sm:$0xff] %v22
    %36 = vst [vmem:[%s3 + $0x68] sm:$0xff] %v22
    %37 = vst [vmem:[%s3 + $0x70] sm:$0xff] %v22
    %38 = vst [vmem:[%s3 + $0x78] sm:$0xff] %v22
  $region17: #{topk_pool_reg_forward.2} parent=0 // pred_fallthru
    _
  %v39 = vld [vmem:[%s3] sm:$0xff]
  %v40 = vld [vmem:[%s3 + $0x8] sm:$0xff]
  %v41 = vld [vmem:[%s3 + $0x10] sm:$0xff]
  %v42 = vld [vmem:[%s3 + $0x18] sm:$0xff]
  %v43 = vld [vmem:[%s3 + $0x20] sm:$0xff]
  %v44 = vld [vmem:[%s3 + $0x28] sm:$0xff]
  %v45 = vld [vmem:[%s3 + $0x30] sm:$0xff]
  %v46 = vld [vmem:[%s3 + $0x38] sm:$0xff]
  %v47 = vld [vmem:[%s3 + $0x40] sm:$0xff]
  %v48 = vld [vmem:[%s3 + $0x48] sm:$0xff]
  %v49 = vld [vmem:[%s3 + $0x50] sm:$0xff]
  %v50 = vld [vmem:[%s3 + $0x58] sm:$0xff]
  %v51 = vld [vmem:[%s3 + $0x60] sm:$0xff]
  %v52 = vld [vmem:[%s3 + $0x68] sm:$0xff]
  %v53 = vld [vmem:[%s3 + $0x70] sm:$0xff]
  %v54 = vld [vmem:[%s3 + $0x78] sm:$0xff]
  %v55 = vld [vmem:[%s0] sm:$0xff]
  %v56 = vld [vmem:[%s0 + $0x8] sm:$0xff]
  %v57 = vld [vmem:[%s0 + $0x10] sm:$0xff]
  %v58 = vld [vmem:[%s0 + $0x18] sm:$0xff]
  %v59 = vld [vmem:[%s0 + $0x20] sm:$0xff]
  %v60 = vld [vmem:[%s0 + $0x28] sm:$0xff]
  %v61 = vld [vmem:[%s0 + $0x30] sm:$0xff]
  %v62 = vld [vmem:[%s0 + $0x38] sm:$0xff]
  %v63 = vld [vmem:[%s0 + $0x40] sm:$0xff]
  %v64 = vld [vmem:[%s0 + $0x48] sm:$0xff]
  %v65 = vld [vmem:[%s0 + $0x50] sm:$0xff]
  %v66 = vld [vmem:[%s0 + $0x58] sm:$0xff]
  %v67 = vld [vmem:[%s0 + $0x60] sm:$0xff]
  %v68 = vld [vmem:[%s0 + $0x68] sm:$0xff]
  %v69 = vld [vmem:[%s0 + $0x70] sm:$0xff]
  %v70 = vld [vmem:[%s0 + $0x78] sm:$0xff]
  %v71 = vld [vmem:[%s1] sm:$0xff]
  %v72 = vld [vmem:[%s1 + $0x8] sm:$0xff]
  %v73 = vld [vmem:[%s1 + $0x10] sm:$0xff]
  %v74 = vld [vmem:[%s1 + $0x18] sm:$0xff]
  %v75 = vld [vmem:[%s1 + $0x20] sm:$0xff]
  %v76 = vld [vmem:[%s1 + $0x28] sm:$0xff]
  %v77 = vld [vmem:[%s1 + $0x30] sm:$0xff]
  %v78 = vld [vmem:[%s1 + $0x38] sm:$0xff]
  %v79 = vld [vmem:[%s1 + $0x40] sm:$0xff]
  %v80 = vld [vmem:[%s1 + $0x48] sm:$0xff]
  %v81 = vld [vmem:[%s1 + $0x50] sm:$0xff]
  %v82 = vld [vmem:[%s1 + $0x58] sm:$0xff]
  %v83 = vld [vmem:[%s1 + $0x60] sm:$0xff]
  %v84 = vld [vmem:[%s1 + $0x68] sm:$0xff]
  %v85 = vld [vmem:[%s1 + $0x70] sm:$0xff]
  %v86 = vld [vmem:[%s1 + $0x78] sm:$0xff]
  %87 = vmatpush.msra.mxu0 %v86
  %88 = vmatpush.msra.mxu0 %v85
  %89 = vmatpush.msra.mxu0 %v84
  %90 = vmatpush.msra.mxu0 %v83
  %91 = vmatpush.msra.mxu0 %v82
  %92 = vmatpush.msra.mxu0 %v81
  %93 = vmatpush.msra.mxu0 %v80
  %94 = vmatpush.msra.mxu0 %v79
  %95 = vmatpush.msra.mxu0 %v78
  %96 = vmatpush.msra.mxu0 %v77
  %97 = vmatpush.msra.mxu0 %v76
  %98 = vmatpush.msra.mxu0 %v75
  %99 = vmatpush.msra.mxu0 %v74
  %100 = vmatpush.msra.mxu0 %v73
  %101 = vmatpush.msra.mxu0 %v72
  %102 = vmatpush.msra.mxu0 %v71
  %103 = vmatmul.f32.gmra.mxu0 %v55
  %v104 = vpop.f32.mrf.mxu0
  %v105 = vadd.f32 0.0, %v104
  %106 = vmatmul.f32.gmra.mxu0 %v56
  %v107 = vpop.f32.mrf.mxu0
  %v108 = vadd.f32 0.0, %v107
  %109 = vmatmul.f32.gmra.mxu0 %v57
  %v110 = vpop.f32.mrf.mxu0
  %v111 = vadd.f32 0.0, %v110
  %112 = vmatmul.f32.gmra.mxu0 %v58
  %v113 = vpop.f32.mrf.mxu0
  %v114 = vadd.f32 0.0, %v113
  %115 = vmatmul.f32.gmra.mxu0 %v59
  %v116 = vpop.f32.mrf.mxu0
  %v117 = vadd.f32 0.0, %v116
  %118 = vmatmul.f32.gmra.mxu0 %v60
  %v119 = vpop.f32.mrf.mxu0
  %v120 = vadd.f32 0.0, %v119
  %121 = vmatmul.f32.gmra.mxu0 %v61
  %v122 = vpop.f32.mrf.mxu0
  %v123 = vadd.f32 0.0, %v122
  %124 = vmatmul.f32.gmra.mxu0 %v62
  %v125 = vpop.f32.mrf.mxu0
  %v126 = vadd.f32 0.0, %v125
  %127 = vmatmul.f32.gmra.mxu0 %v63
  %v128 = vpop.f32.mrf.mxu0
  %v129 = vadd.f32 0.0, %v128
  %130 = vmatmul.f32.gmra.mxu0 %v64
  %v131 = vpop.f32.mrf.mxu0
  %v132 = vadd.f32 0.0, %v131
  %133 = vmatmul.f32.gmra.mxu0 %v65
  %v134 = vpop.f32.mrf.mxu0
  %v135 = vadd.f32 0.0, %v134
  %136 = vmatmul.f32.gmra.mxu0 %v66
  %v137 = vpop.f32.mrf.mxu0
  %v138 = vadd.f32 0.0, %v137
  %139 = vmatmul.f32.gmra.mxu0 %v67
  %v140 = vpop.f32.mrf.mxu0
  %v141 = vadd.f32 0.0, %v140
  %142 = vmatmul.f32.gmra.mxu0 %v68
  %v143 = vpop.f32.mrf.mxu0
  %v144 = vadd.f32 0.0, %v143
  %145 = vmatmul.f32.gmra.mxu0 %v69
  %v146 = vpop.f32.mrf.mxu0
  %v147 = vadd.f32 0.0, %v146
  %148 = vmatmul.f32.gmra.mxu0 %v70
  %v149 = vpop.f32.mrf.mxu0
  %v150 = vadd.f32 0.0, %v149
  %151 = vdwg.mxu0
  %v152 = vadd.f32 %v39, %v105
  %v153 = vadd.f32 %v40, %v108
  %v154 = vadd.f32 %v41, %v111
  %v155 = vadd.f32 %v42, %v114
  %v156 = vadd.f32 %v43, %v117
  %v157 = vadd.f32 %v44, %v120
  %v158 = vadd.f32 %v45, %v123
  %v159 = vadd.f32 %v46, %v126
  %v160 = vadd.f32 %v47, %v129
  %v161 = vadd.f32 %v48, %v132
  %v162 = vadd.f32 %v49, %v135
  %v163 = vadd.f32 %v50, %v138
  %v164 = vadd.f32 %v51, %v141
  %v165 = vadd.f32 %v52, %v144
  %v166 = vadd.f32 %v53, %v147
  %v167 = vadd.f32 %v54, %v150
  %168 = vst [vmem:[%s3] sm:$0xff] %v152
  %169 = vst [vmem:[%s3 + $0x8] sm:$0xff] %v153
  %170 = vst [vmem:[%s3 + $0x10] sm:$0xff] %v154
  %171 = vst [vmem:[%s3 + $0x18] sm:$0xff] %v155
  %172 = vst [vmem:[%s3 + $0x20] sm:$0xff] %v156
  %173 = vst [vmem:[%s3 + $0x28] sm:$0xff] %v157
  %174 = vst [vmem:[%s3 + $0x30] sm:$0xff] %v158
  %175 = vst [vmem:[%s3 + $0x38] sm:$0xff] %v159
  %176 = vst [vmem:[%s3 + $0x40] sm:$0xff] %v160
  %177 = vst [vmem:[%s3 + $0x48] sm:$0xff] %v161
  %178 = vst [vmem:[%s3 + $0x50] sm:$0xff] %v162
  %179 = vst [vmem:[%s3 + $0x58] sm:$0xff] %v163
  %180 = vst [vmem:[%s3 + $0x60] sm:$0xff] %v164
  %181 = vst [vmem:[%s3 + $0x68] sm:$0xff] %v165
  %182 = vst [vmem:[%s3 + $0x70] sm:$0xff] %v166
  %183 = vst [vmem:[%s3 + $0x78] sm:$0xff] %v167
  // Predicated region
  $region18: #{topk_pool_reg_forward.2} parent=0 // pred_check
    _
  $region19: #{topk_pool_reg_forward.2} parent=0 // pred_check_branch
    %185 = sbr.rel (0) target = $region21
  $region20: #{topk_pool_reg_forward.2} parent=0 // pred_region
    _
  $region21: #{topk_pool_reg_forward.2} parent=0 // pred_fallthru
    _
  // Predicated region
  $region22: #{topk_pool_reg_forward.2} parent=0 // pred_check
    _
  $region23: #{topk_pool_reg_forward.2} parent=0 // pred_check_branch
    %187 = sbr.rel (0) target = $region25
  $region24: #{topk_pool_reg_forward.2} parent=0 // pred_region
    _
  $region25: #{topk_pool_reg_forward.2} parent=0 // pred_fallthru
    _

// kernel: topk_pool_reg_forward.3
$region0: #{topk_pool_reg_forward.3}
  #allocation0 [shape = 'u32[]', space=smem, size = 0x4, offset = 0x4, fixed_abs, tag = 'smem constant byte address 0x4 - core index']
  #allocation1 [shape = 'u32[72,128]{1,0:T(1,128)}', space=vmem, size = 0x9000, scoped, tag = 'internal scratch']
  #allocation2 [shape = 'f32[128,128]{1,0:T(8,128)}', space=vmem, size = 0x10000, scoped, tag = 'scratch operand']
  #allocation3 [shape = 'f32[8,128]{1,0:T(8,128)}', space=vmem, size = 0x1000, scoped, tag = 'scratch operand']
  %s0 = inlined_call_operand.vmem [shape: f32[128,128], index: 0, kind: input, shape index: {}]
  %s1 = inlined_call_operand.vmem [shape: f32[128,128], index: 1, kind: input, shape index: {}]
  %s2 = inlined_call_operand.vmem [shape: f32[8,128], index: 2, kind: input, shape index: {}]
  %s3 = inlined_call_operand.vmem [shape: f32[8,128], index: 3, kind: input, shape index: {}]
  %s4 = inlined_call_operand.vmem [shape: f32[128,128], index: 4, kind: input, shape index: {}]
  %s5 = inlined_call_operand.vmem [shape: f32[1,128], index: 5, kind: input, shape index: {}]
  %s6 = inlined_call_operand.vmem [shape: f32[8,128], index: 6, kind: output, shape index: {}]
  %s7 = sld [smem:[#allocation0]]
  $region50: #{topk_pool_reg_forward.3} parent=0
    _
  %s9 = ssub.s32 1, %s7
  %s10 = scalar_select 0, %s9, %s7
  // Predicated region
  $region2: #{topk_pool_reg_forward.3} parent=0 // pred_check
    _
  $region3: #{topk_pool_reg_forward.3} parent=0 // pred_check_branch
    %12 = sbr.rel (0) target = $region5
  $region4: #{topk_pool_reg_forward.3} parent=0 // pred_region
    _
  $region5: #{topk_pool_reg_forward.3} parent=0 // pred_fallthru
    _
  // Predicated region
  $region6: #{topk_pool_reg_forward.3} parent=0 // pred_check
    _
  $region7: #{topk_pool_reg_forward.3} parent=0 // pred_check_branch
    %14 = sbr.rel (0) target = $region9
  $region8: #{topk_pool_reg_forward.3} parent=0 // pred_region
    _
  $region9: #{topk_pool_reg_forward.3} parent=0 // pred_fallthru
    _
  // Predicated region
  $region10: #{topk_pool_reg_forward.3} parent=0 // pred_check
    _
  $region11: #{topk_pool_reg_forward.3} parent=0 // pred_check_branch
    %16 = sbr.rel (0) target = $region13
  $region12: #{topk_pool_reg_forward.3} parent=0 // pred_region
    _
  $region13: #{topk_pool_reg_forward.3} parent=0 // pred_fallthru
    _
  // Predicated region
  $region14: #{topk_pool_reg_forward.3} parent=0 // pred_check
    _
  $region15: #{topk_pool_reg_forward.3} parent=0 // pred_check_branch
    %18 = sbr.rel (0) target = $region17
  $region16: #{topk_pool_reg_forward.3} parent=0 // pred_region
    _
  $region17: #{topk_pool_reg_forward.3} parent=0 // pred_fallthru
    _
  // Predicated region
  $region18: #{topk_pool_reg_forward.3} parent=0 // pred_check
    _
  $region19: #{topk_pool_reg_forward.3} parent=0 // pred_check_branch
    %20 = sbr.rel (0) target = $region21
  $region20: #{topk_pool_reg_forward.3} parent=0 // pred_region
    _
  $region21: #{topk_pool_reg_forward.3} parent=0 // pred_fallthru
    _
  // Predicated region
  $region22: #{topk_pool_reg_forward.3} parent=0 // pred_check
    _
  $region23: #{topk_pool_reg_forward.3} parent=0 // pred_check_branch
    %22 = sbr.rel (0) target = $region25
  $region24: #{topk_pool_reg_forward.3} parent=0 // pred_region
    _
  $region25: #{topk_pool_reg_forward.3} parent=0 // pred_fallthru
    _
  %p23 = scmp.eq.s32.totalorder 0, 0
  %p24 = scmp.eq.s32.totalorder 0, 0
  %p25 = pnand %p23, %p24
  %p26 = pneg %p25
  // Predicated region
  $region26: #{topk_pool_reg_forward.3} parent=0 // pred_check
    _
  $region27: #{topk_pool_reg_forward.3} parent=0 // pred_check_branch
    %28 = sbr.rel (%p25) target = $region29
  $region28: #{topk_pool_reg_forward.3} parent=0 // pred_region
    %29 = vst [vmem:[#allocation3] sm:$0xff] 0.0
  $region29: #{topk_pool_reg_forward.3} parent=0 // pred_fallthru
    _
  // Predicated region
  $region30: #{topk_pool_reg_forward.3} parent=0 // pred_check
    %p30 = pneg %p24
  $region31: #{topk_pool_reg_forward.3} parent=0 // pred_check_branch
    %32 = sbr.rel (%p30) target = $region33
  $region32: #{topk_pool_reg_forward.3} parent=0 // pred_region
    %33 = vst [vmem:[#allocation2] sm:$0xff] 0.0
    %34 = vst [vmem:[#allocation2 + $0x8] sm:$0xff] 0.0
    %35 = vst [vmem:[#allocation2 + $0x10] sm:$0xff] 0.0
    %36 = vst [vmem:[#allocation2 + $0x18] sm:$0xff] 0.0
    %37 = vst [vmem:[#allocation2 + $0x20] sm:$0xff] 0.0
    %38 = vst [vmem:[#allocation2 + $0x28] sm:$0xff] 0.0
    %39 = vst [vmem:[#allocation2 + $0x30] sm:$0xff] 0.0
    %40 = vst [vmem:[#allocation2 + $0x38] sm:$0xff] 0.0
    %41 = vst [vmem:[#allocation2 + $0x40] sm:$0xff] 0.0
    %42 = vst [vmem:[#allocation2 + $0x48] sm:$0xff] 0.0
    %43 = vst [vmem:[#allocation2 + $0x50] sm:$0xff] 0.0
    %44 = vst [vmem:[#allocation2 + $0x58] sm:$0xff] 0.0
    %45 = vst [vmem:[#allocation2 + $0x60] sm:$0xff] 0.0
    %46 = vst [vmem:[#allocation2 + $0x68] sm:$0xff] 0.0
    %47 = vst [vmem:[#allocation2 + $0x70] sm:$0xff] 0.0
    %48 = vst [vmem:[#allocation2 + $0x78] sm:$0xff] 0.0
  $region33: #{topk_pool_reg_forward.3} parent=0 // pred_fallthru
    _
  %v49 = vld [vmem:[#allocation2] sm:$0xff]
  %v50 = vld [vmem:[#allocation2 + $0x8] sm:$0xff]
  %v51 = vld [vmem:[#allocation2 + $0x10] sm:$0xff]
  %v52 = vld [vmem:[#allocation2 + $0x18] sm:$0xff]
  %v53 = vld [vmem:[#allocation2 + $0x20] sm:$0xff]
  %v54 = vld [vmem:[#allocation2 + $0x28] sm:$0xff]
  %v55 = vld [vmem:[#allocation2 + $0x30] sm:$0xff]
  %v56 = vld [vmem:[#allocation2 + $0x38] sm:$0xff]
  %v57 = vld [vmem:[#allocation2 + $0x40] sm:$0xff]
  %v58 = vld [vmem:[#allocation2 + $0x48] sm:$0xff]
  %v59 = vld [vmem:[#allocation2 + $0x50] sm:$0xff]
  %v60 = vld [vmem:[#allocation2 + $0x58] sm:$0xff]
  %v61 = vld [vmem:[#allocation2 + $0x60] sm:$0xff]
  %v62 = vld [vmem:[#allocation2 + $0x68] sm:$0xff]
  %v63 = vld [vmem:[#allocation2 + $0x70] sm:$0xff]
  %v64 = vld [vmem:[#allocation2 + $0x78] sm:$0xff]
  %v65 = vld [vmem:[%s0] sm:$0xff]
  %v66 = vld [vmem:[%s0 + $0x8] sm:$0xff]
  %v67 = vld [vmem:[%s0 + $0x10] sm:$0xff]
  %v68 = vld [vmem:[%s0 + $0x18] sm:$0xff]
  %v69 = vld [vmem:[%s0 + $0x20] sm:$0xff]
  %v70 = vld [vmem:[%s0 + $0x28] sm:$0xff]
  %v71 = vld [vmem:[%s0 + $0x30] sm:$0xff]
  %v72 = vld [vmem:[%s0 + $0x38] sm:$0xff]
  %v73 = vld [vmem:[%s0 + $0x40] sm:$0xff]
  %v74 = vld [vmem:[%s0 + $0x48] sm:$0xff]
  %v75 = vld [vmem:[%s0 + $0x50] sm:$0xff]
  %v76 = vld [vmem:[%s0 + $0x58] sm:$0xff]
  %v77 = vld [vmem:[%s0 + $0x60] sm:$0xff]
  %v78 = vld [vmem:[%s0 + $0x68] sm:$0xff]
  %v79 = vld [vmem:[%s0 + $0x70] sm:$0xff]
  %v80 = vld [vmem:[%s0 + $0x78] sm:$0xff]
  %v81 = vld [vmem:[%s1] sm:$0xff]
  %v82 = vld [vmem:[%s1 + $0x8] sm:$0xff]
  %v83 = vld [vmem:[%s1 + $0x10] sm:$0xff]
  %v84 = vld [vmem:[%s1 + $0x18] sm:$0xff]
  %v85 = vld [vmem:[%s1 + $0x20] sm:$0xff]
  %v86 = vld [vmem:[%s1 + $0x28] sm:$0xff]
  %v87 = vld [vmem:[%s1 + $0x30] sm:$0xff]
  %v88 = vld [vmem:[%s1 + $0x38] sm:$0xff]
  %v89 = vld [vmem:[%s1 + $0x40] sm:$0xff]
  %v90 = vld [vmem:[%s1 + $0x48] sm:$0xff]
  %v91 = vld [vmem:[%s1 + $0x50] sm:$0xff]
  %v92 = vld [vmem:[%s1 + $0x58] sm:$0xff]
  %v93 = vld [vmem:[%s1 + $0x60] sm:$0xff]
  %v94 = vld [vmem:[%s1 + $0x68] sm:$0xff]
  %v95 = vld [vmem:[%s1 + $0x70] sm:$0xff]
  %v96 = vld [vmem:[%s1 + $0x78] sm:$0xff]
  %97 = vmatpush.msra.mxu0 %v96
  %98 = vmatpush.msra.mxu0 %v95
  %99 = vmatpush.msra.mxu0 %v94
  %100 = vmatpush.msra.mxu0 %v93
  %101 = vmatpush.msra.mxu0 %v92
  %102 = vmatpush.msra.mxu0 %v91
  %103 = vmatpush.msra.mxu0 %v90
  %104 = vmatpush.msra.mxu0 %v89
  %105 = vmatpush.msra.mxu0 %v88
  %106 = vmatpush.msra.mxu0 %v87
  %107 = vmatpush.msra.mxu0 %v86
  %108 = vmatpush.msra.mxu0 %v85
  %109 = vmatpush.msra.mxu0 %v84
  %110 = vmatpush.msra.mxu0 %v83
  %111 = vmatpush.msra.mxu0 %v82
  %112 = vmatpush.msra.mxu0 %v81
  %113 = vmatmul.f32.gmra.mxu0 %v65
  %v114 = vpop.f32.mrf.mxu0
  %v115 = vadd.f32 0.0, %v114
  %116 = vmatmul.f32.gmra.mxu0 %v66
  %v117 = vpop.f32.mrf.mxu0
  %v118 = vadd.f32 0.0, %v117
  %119 = vmatmul.f32.gmra.mxu0 %v67
  %v120 = vpop.f32.mrf.mxu0
  %v121 = vadd.f32 0.0, %v120
  %122 = vmatmul.f32.gmra.mxu0 %v68
  %v123 = vpop.f32.mrf.mxu0
  %v124 = vadd.f32 0.0, %v123
  %125 = vmatmul.f32.gmra.mxu0 %v69
  %v126 = vpop.f32.mrf.mxu0
  %v127 = vadd.f32 0.0, %v126
  %128 = vmatmul.f32.gmra.mxu0 %v70
  %v129 = vpop.f32.mrf.mxu0
  %v130 = vadd.f32 0.0, %v129
  %131 = vmatmul.f32.gmra.mxu0 %v71
  %v132 = vpop.f32.mrf.mxu0
  %v133 = vadd.f32 0.0, %v132
  %134 = vmatmul.f32.gmra.mxu0 %v72
  %v135 = vpop.f32.mrf.mxu0
  %v136 = vadd.f32 0.0, %v135
  %137 = vmatmul.f32.gmra.mxu0 %v73
  %v138 = vpop.f32.mrf.mxu0
  %v139 = vadd.f32 0.0, %v138
  %140 = vmatmul.f32.gmra.mxu0 %v74
  %v141 = vpop.f32.mrf.mxu0
  %v142 = vadd.f32 0.0, %v141
  %143 = vmatmul.f32.gmra.mxu0 %v75
  %v144 = vpop.f32.mrf.mxu0
  %v145 = vadd.f32 0.0, %v144
  %146 = vmatmul.f32.gmra.mxu0 %v76
  %v147 = vpop.f32.mrf.mxu0
  %v148 = vadd.f32 0.0, %v147
  %149 = vmatmul.f32.gmra.mxu0 %v77
  %v150 = vpop.f32.mrf.mxu0
  %v151 = vadd.f32 0.0, %v150
  %152 = vmatmul.f32.gmra.mxu0 %v78
  %v153 = vpop.f32.mrf.mxu0
  %v154 = vadd.f32 0.0, %v153
  %155 = vmatmul.f32.gmra.mxu0 %v79
  %v156 = vpop.f32.mrf.mxu0
  %v157 = vadd.f32 0.0, %v156
  %158 = vmatmul.f32.gmra.mxu0 %v80
  %v159 = vpop.f32.mrf.mxu0
  %v160 = vadd.f32 0.0, %v159
  %161 = vdwg.mxu0
  %v162 = vadd.f32 %v49, %v115
  %v163 = vadd.f32 %v50, %v118
  %v164 = vadd.f32 %v51, %v121
  %v165 = vadd.f32 %v52, %v124
  %v166 = vadd.f32 %v53, %v127
  %v167 = vadd.f32 %v54, %v130
  %v168 = vadd.f32 %v55, %v133
  %v169 = vadd.f32 %v56, %v136
  %v170 = vadd.f32 %v57, %v139
  %v171 = vadd.f32 %v58, %v142
  %v172 = vadd.f32 %v59, %v145
  %v173 = vadd.f32 %v60, %v148
  %v174 = vadd.f32 %v61, %v151
  %v175 = vadd.f32 %v62, %v154
  %v176 = vadd.f32 %v63, %v157
  %v177 = vadd.f32 %v64, %v160
  %178 = vst [vmem:[#allocation2] sm:$0xff] %v162
  %179 = vst [vmem:[#allocation2 + $0x8] sm:$0xff] %v163
  %180 = vst [vmem:[#allocation2 + $0x10] sm:$0xff] %v164
  %181 = vst [vmem:[#allocation2 + $0x18] sm:$0xff] %v165
  %182 = vst [vmem:[#allocation2 + $0x20] sm:$0xff] %v166
  %183 = vst [vmem:[#allocation2 + $0x28] sm:$0xff] %v167
  %184 = vst [vmem:[#allocation2 + $0x30] sm:$0xff] %v168
  %185 = vst [vmem:[#allocation2 + $0x38] sm:$0xff] %v169
  %186 = vst [vmem:[#allocation2 + $0x40] sm:$0xff] %v170
  %187 = vst [vmem:[#allocation2 + $0x48] sm:$0xff] %v171
  %188 = vst [vmem:[#allocation2 + $0x50] sm:$0xff] %v172
  %189 = vst [vmem:[#allocation2 + $0x58] sm:$0xff] %v173
  %190 = vst [vmem:[#allocation2 + $0x60] sm:$0xff] %v174
  %191 = vst [vmem:[#allocation2 + $0x68] sm:$0xff] %v175
  %192 = vst [vmem:[#allocation2 + $0x70] sm:$0xff] %v176
  %193 = vst [vmem:[#allocation2 + $0x78] sm:$0xff] %v177
  // Predicated region
  $region34: #{topk_pool_reg_forward.3} parent=0 // pred_check
    %p194 = pneg %p24
  $region35: #{topk_pool_reg_forward.3} parent=0 // pred_check_branch
    %196 = sbr.rel (%p194) target = $region37
  $region36: #{topk_pool_reg_forward.3} parent=0 // pred_region
    %v197 = vld [vmem:[#allocation3] sm:$0xff]
    %v198 = vld [vmem:[%s2] sm:$0xff]
    %v199 = vld [vmem:[#allocation2] sm:$0xff]
    %v200 = vld [vmem:[#allocation2 + $0x8] sm:$0xff]
    %v201 = vld [vmem:[#allocation2 + $0x10] sm:$0xff]
    %v202 = vld [vmem:[#allocation2 + $0x18] sm:$0xff]
    %v203 = vld [vmem:[#allocation2 + $0x20] sm:$0xff]
    %v204 = vld [vmem:[#allocation2 + $0x28] sm:$0xff]
    %v205 = vld [vmem:[#allocation2 + $0x30] sm:$0xff]
    %v206 = vld [vmem:[#allocation2 + $0x38] sm:$0xff]
    %v207 = vld [vmem:[#allocation2 + $0x40] sm:$0xff]
    %v208 = vld [vmem:[#allocation2 + $0x48] sm:$0xff]
    %v209 = vld [vmem:[#allocation2 + $0x50] sm:$0xff]
    %v210 = vld [vmem:[#allocation2 + $0x58] sm:$0xff]
    %v211 = vld [vmem:[#allocation2 + $0x60] sm:$0xff]
    %v212 = vld [vmem:[#allocation2 + $0x68] sm:$0xff]
    %v213 = vld [vmem:[#allocation2 + $0x70] sm:$0xff]
    %v214 = vld [vmem:[#allocation2 + $0x78] sm:$0xff]
    %215 = vmatpush.msra.mxu0 %v214
    %216 = vmatpush.msra.mxu0 %v213
    %217 = vmatpush.msra.mxu0 %v212
    %218 = vmatpush.msra.mxu0 %v211
    %219 = vmatpush.msra.mxu0 %v210
    %220 = vmatpush.msra.mxu0 %v209
    %221 = vmatpush.msra.mxu0 %v208
    %222 = vmatpush.msra.mxu0 %v207
    %223 = vmatpush.msra.mxu0 %v206
    %224 = vmatpush.msra.mxu0 %v205
    %225 = vmatpush.msra.mxu0 %v204
    %226 = vmatpush.msra.mxu0 %v203
    %227 = vmatpush.msra.mxu0 %v202
    %228 = vmatpush.msra.mxu0 %v201
    %229 = vmatpush.msra.mxu0 %v200
    %230 = vmatpush.msra.mxu0 %v199
    %231 = vmatmul.f32.gmra.mxu0 %v198
    %v232 = vpop.f32.mrf.mxu0
    %v233 = vadd.f32 0.0, %v232
    %234 = vdwg.mxu0
    %v235 = vadd.f32 %v197, %v233
    %236 = vst [vmem:[#allocation3] sm:$0xff] %v235
  $region37: #{topk_pool_reg_forward.3} parent=0 // pred_fallthru
    _
  // Predicated region
  $region38: #{topk_pool_reg_forward.3} parent=0 // pred_check
    _
  $region39: #{topk_pool_reg_forward.3} parent=0 // pred_check_branch
    %238 = sbr.rel (%p25) target = $region41
  $region40: #{topk_pool_reg_forward.3} parent=0 // pred_region
    %v239 = vld [vmem:[#allocation3] sm:$0xff]
    %v240 = vld [vmem:[%s3] sm:$0xff]
    %v241 = vadd.f32 %v239, %v240
    %v242 = vld [vmem:[%s4] sm:$0xff]
    %v243 = vld [vmem:[%s4 + $0x8] sm:$0xff]
    %v244 = vld [vmem:[%s4 + $0x10] sm:$0xff]
    %v245 = vld [vmem:[%s4 + $0x18] sm:$0xff]
    %v246 = vld [vmem:[%s4 + $0x20] sm:$0xff]
    %v247 = vld [vmem:[%s4 + $0x28] sm:$0xff]
    %v248 = vld [vmem:[%s4 + $0x30] sm:$0xff]
    %v249 = vld [vmem:[%s4 + $0x38] sm:$0xff]
    %v250 = vld [vmem:[%s4 + $0x40] sm:$0xff]
    %v251 = vld [vmem:[%s4 + $0x48] sm:$0xff]
    %v252 = vld [vmem:[%s4 + $0x50] sm:$0xff]
    %v253 = vld [vmem:[%s4 + $0x58] sm:$0xff]
    %v254 = vld [vmem:[%s4 + $0x60] sm:$0xff]
    %v255 = vld [vmem:[%s4 + $0x68] sm:$0xff]
    %v256 = vld [vmem:[%s4 + $0x70] sm:$0xff]
    %v257 = vld [vmem:[%s4 + $0x78] sm:$0xff]
    %v258 = vld [vmem:[%s5] sm:$0x1]
    %v260 = vperm.slane %v258, 0
    %262 = vmatpush.msra.mxu0 %v257
    %263 = vmatpush.msra.mxu0 %v256
    %264 = vmatpush.msra.mxu0 %v255
    %265 = vmatpush.msra.mxu0 %v254
    %266 = vmatpush.msra.mxu0 %v253
    %267 = vmatpush.msra.mxu0 %v252
    %268 = vmatpush.msra.mxu0 %v251
    %269 = vmatpush.msra.mxu0 %v250
    %270 = vmatpush.msra.mxu0 %v249
    %271 = vmatpush.msra.mxu0 %v248
    %272 = vmatpush.msra.mxu0 %v247
    %273 = vmatpush.msra.mxu0 %v246
    %274 = vmatpush.msra.mxu0 %v245
    %275 = vmatpush.msra.mxu0 %v244
    %276 = vmatpush.msra.mxu0 %v243
    %277 = vmatpush.msra.mxu0 %v242
    %278 = vmatmul.f32.gmra.mxu0 %v241
    %v279 = vpop.f32.mrf.mxu0
    %v280 = vadd.f32 %v260, %v279
    %281 = vdwg.mxu0
    %282 = vst [vmem:[%s6] sm:$0xff] %v280
  $region41: #{topk_pool_reg_forward.3} parent=0 // pred_fallthru
    _
  // Predicated region
  $region42: #{topk_pool_reg_forward.3} parent=0 // pred_check
    _
  $region43: #{topk_pool_reg_forward.3} parent=0 // pred_check_branch
    %284 = sbr.rel (0) target = $region45
  $region44: #{topk_pool_reg_forward.3} parent=0 // pred_region
    _
  $region45: #{topk_pool_reg_forward.3} parent=0 // pred_fallthru
    _
  // Predicated region
  $region46: #{topk_pool_reg_forward.3} parent=0 // pred_check
    _
  $region47: #{topk_pool_reg_forward.3} parent=0 // pred_check_branch
    %286 = sbr.rel (0) target = $region49
  $region48: #{topk_pool_reg_forward.3} parent=0 // pred_region
    _
  $region49: #{topk_pool_reg_forward.3} parent=0 // pred_fallthru
    _

</llo_original>
